<compile_context>
chip_gen: v6e
topology: v6e:2x2x1
jax: 0.10.0
libtpu: 0.0.40
codegen_flags: <defaults>
</compile_context>

<pallas_src>
import functools

import jax
import jax.numpy as jnp
from jax.experimental import pallas as pl
from jax.experimental.pallas import tpu as pltpu

_LANES = 128


def _cdiv(a: int, b: int) -> int:
    return -(-a // b)


def _round_up(x: int, m: int) -> int:
    return (x + m - 1) // m * m


def _tpu_config():
    """Returns (num_tensorcores, max_tile_rows, vmem_limit_bytes) for this device."""
    kind = ""
    try:
        kind = jax.devices()[0].device_kind.lower()
    except Exception:
        pass
    if "v7" in kind:
        # 2 TCs/chip, ~3.2 TB/s HBM, 64 MiB VMEM/TC -> bigger tiles + headroom.
        return 2, 8192, 48 * 1024 * 1024
    if "v5p" in kind or "v4" in kind or "v3" in kind:
        # Megacore generations: 2 TensorCores per device.
        return 2, 8192, 32 * 1024 * 1024
    # v5e / v6e / unknown: single TensorCore per chip.
    return 1, 8192, 32 * 1024 * 1024


def _mse_partial_kernel(p_ref, l_ref, o_ref, *, rows, tile_rows, chunks):
    # o_ref block: (1, 8, 128) f32 per-core accumulator, resident across the
    # "arbitrary" reduction axis (grid axis 1).
    i = pl.program_id(1)

    @pl.when(i == 0)
    def _init():
        o_ref[...] = jnp.zeros_like(o_ref)

    # Logical (unclamped) block index along the row axis. The index_map clamps
    # the DMA window to the last in-bounds block, so a grid step whose logical
    # window lies entirely past `rows` just re-reads that block and is skipped.
    block = pl.program_id(0) * chunks + i
    valid_rows = rows - block * tile_rows

    @pl.when(valid_rows > 0)
    def _accumulate():
        p = p_ref[...].astype(jnp.float32)          # (tile_rows, 128)
        l = l_ref[...].astype(jnp.float32)
        d = p - l
        # Mask rows past the true row count (contents of the padded part of a
        # boundary block are unspecified). Pure VPU select; hidden under DMA.
        row_ids = jax.lax.broadcasted_iota(jnp.int32, (tile_rows, 1), 0)
        sq = jnp.where(row_ids < valid_rows, d * d, 0.0)
        # Fold whole (8, 128) vreg tiles onto the accumulator: plain vreg-wise
        # VPU adds (no XLU reduce, no masked (1,1) stores).
        o_ref[0] += jnp.sum(sq.reshape(-1, 8, _LANES), axis=0)


def recon_loss(pred: jax.Array, label: jax.Array, *,
               max_tile_rows: int | None = None,
               num_cores: int | None = None) -> jax.Array:
    """mean((pred - label)^2) over all elements. Returns scalar float32."""
    assert pred.shape == label.shape, (pred.shape, label.shape)
    total = pred.size
    if total == 0:
        return jnp.float32(jnp.nan)   # matches torch MSELoss('mean') on empty input

    cfg_cores, cfg_tile, vmem_limit = _tpu_config()
    if max_tile_rows is None:
        max_tile_rows = cfg_tile
    if num_cores is None:
        num_cores = cfg_cores

    # Flatten (free, contiguous view; no transpose).
    pf = pred.reshape(-1)
    lf = label.reshape(-1)

    rem = (-total) % _LANES
    if rem:
        # TODO(synk): element counts not divisible by 128 still need a pad so
        # the lane-dense 2-D view exists; padded zeros contribute (0-0)^2 = 0.
        pf = jnp.pad(pf, (0, rem))
        lf = jnp.pad(lf, (0, rem))
    rows = (total + rem) // _LANES

    p2d = pf.reshape(rows, _LANES)   # contiguous reshape: free
    l2d = lf.reshape(rows, _LANES)

    # Sublane multiple matching the narrowest input dtype (8 f32 / 16 bf16 / 32 i8).
    min_item = min(jnp.dtype(pred.dtype).itemsize, jnp.dtype(label.dtype).itemsize)
    sub = max(8, 32 // max(1, min_item))

    tile_rows = min(max_tile_rows, _round_up(rows, sub))
    nblocks = _cdiv(rows, tile_rows)
    num_cores = max(1, min(num_cores, nblocks))
    chunks = _cdiv(nblocks, num_cores)

    # Clamp the DMA window to the last in-bounds block; logical steps past the
    # end are skipped inside the kernel (valid_rows <= 0).
    in_map = lambda c, i: (jnp.minimum(c * chunks + i, nblocks - 1), 0)

    kernel = functools.partial(_mse_partial_kernel,
                               rows=rows, tile_rows=tile_rows, chunks=chunks)

    bytes_accessed = (total * (jnp.dtype(pred.dtype).itemsize
                               + jnp.dtype(label.dtype).itemsize)
                      + num_cores * 8 * _LANES * 4)
    cost = pl.CostEstimate(flops=3 * total, transcendentals=0,
                           bytes_accessed=bytes_accessed)

    partials = pl.pallas_call(
        kernel,
        out_shape=jax.ShapeDtypeStruct((num_cores, 8, _LANES), jnp.float32),
        grid_spec=pl.GridSpec(
            grid=(num_cores, chunks),
            in_specs=[
                pl.BlockSpec((tile_rows, _LANES), in_map),
                pl.BlockSpec((tile_rows, _LANES), in_map),
            ],
            out_specs=pl.BlockSpec((1, 8, _LANES), lambda c, i: (c, 0, 0)),
        ),
        compiler_params=pltpu.CompilerParams(
            dimension_semantics=("parallel", "arbitrary"),
            vmem_limit_bytes=vmem_limit,
        ),
        cost_estimate=cost,
    )(p2d, l2d)

    # Tiny final reduction + mean normalization (cheap scalar glue).
    return (jnp.sum(partials) / jnp.float32(total)).astype(jnp.float32)


def _reference(pred, label):
    p = pred.astype(jnp.float32)
    l = label.astype(jnp.float32)
    return jnp.mean((p - l) ** 2)


if __name__ == "__main__":
    key = jax.random.PRNGKey(0)
    k1, k2, k3, k4 = jax.random.split(key, 4)

    # 1) Small NCHW tensors, as a reconstruction loss would see (128-aligned).
    pred = jax.random.normal(k1, (2, 4, 16, 16), dtype=jnp.float32)
    label = jax.random.normal(k2, (2, 4, 16, 16), dtype=jnp.float32)
    loss = jax.block_until_ready(recon_loss(pred, label))
    ref = _reference(pred, label)
    assert jnp.allclose(loss, ref, rtol=1e-5, atol=1e-6), (loss, ref)

    # 2) Exercise the ragged-tail masking + multi-core grid path with a tiny
    #    forced tile (rows=19 not divisible by tile_rows=8, one dead block).
    pred2 = jax.random.normal(k3, (19, 128), dtype=jnp.float32)
    label2 = jax.random.normal(k4, (19, 128), dtype=jnp.float32)
    loss2 = jax.block_until_ready(
        recon_loss(pred2, label2, max_tile_rows=8, num_cores=2))
    ref2 = _reference(pred2, label2)
    assert jnp.allclose(loss2, ref2, rtol=1e-5, atol=1e-6), (loss2, ref2)

    print("KERNEL_OK")
</pallas_src>

<mosaic_0001>
module attributes {stable_mosaic.version = 11 : i64} {
  func.func @_mse_partial_kernel(%arg0: i32, %arg1: i32, %arg2: memref<16x128xf32, #tpu.memory_space<vmem>>, %arg3: memref<16x128xf32, #tpu.memory_space<vmem>>, %arg4: memref<1x8x128xf32, #tpu.memory_space<vmem>>) attributes {dimension_semantics = [#tpu.dimension_semantics<parallel>, #tpu.dimension_semantics<arbitrary>], iteration_bounds = array<i64: 1, 1>, scalar_prefetch = 0 : i64, scratch_operands = 0 : i64, tpu.core_type = #tpu.core_type<tc>, window_params = [{transform_indices = @transform_0, window_bounds = array<i64: 16, 128>}, {transform_indices = @transform_1, window_bounds = array<i64: 16, 128>}, {transform_indices = @transform_2, window_bounds = array<i64: 1, 8, 128>}]} {
    %c0_i32 = arith.constant 0 : i32
    %0 = arith.cmpi eq, %arg1, %c0_i32 : i32
    %1 = arith.extui %0 : i1 to i32
    %c0_i32_0 = arith.constant 0 : i32
    %2 = arith.cmpi ne, %1, %c0_i32_0 : i32
    scf.if %2 {
      %cst = arith.constant 0.000000e+00 : f32
      %10 = vector.broadcast %cst : f32 to vector<1x8x128xf32>
      %c0 = arith.constant 0 : index
      %c0_4 = arith.constant 0 : index
      %c0_5 = arith.constant 0 : index
      %11 = vector.load %arg4[%c0, %c0_4, %c0_5] : memref<1x8x128xf32, #tpu.memory_space<vmem>>, vector<1x8x128xf32>
      tpu.vector_store %arg4[%c0, %c0_4, %c0_5], %10 {strides = array<i32>} : memref<1x8x128xf32, #tpu.memory_space<vmem>>, vector<1x8x128xf32>,
    } else {
    }
    %c1_i32 = arith.constant 1 : i32
    %3 = arith.muli %arg0, %c1_i32 : i32
    %4 = arith.addi %3, %arg1 : i32
    %c16_i32 = arith.constant 16 : i32
    %5 = arith.muli %4, %c16_i32 : i32
    %c16_i32_1 = arith.constant 16 : i32
    %6 = arith.subi %c16_i32_1, %5 : i32
    %c0_i32_2 = arith.constant 0 : i32
    %7 = arith.cmpi sgt, %6, %c0_i32_2 : i32
    %8 = arith.extui %7 : i1 to i32
    %c0_i32_3 = arith.constant 0 : i32
    %9 = arith.cmpi ne, %8, %c0_i32_3 : i32
    scf.if %9 {
      %c0 = arith.constant 0 : index
      %c0_4 = arith.constant 0 : index
      %10 = vector.load %arg2[%c0, %c0_4] : memref<16x128xf32, #tpu.memory_space<vmem>>, vector<16x128xf32>
      %c0_5 = arith.constant 0 : index
      %c0_6 = arith.constant 0 : index
      %11 = vector.load %arg3[%c0_5, %c0_6] : memref<16x128xf32, #tpu.memory_space<vmem>>, vector<16x128xf32>
      %12 = arith.subf %10, %11 : vector<16x128xf32>
      %13 = tpu.iota {dimensions = array<i32: 0>} : vector<16x1xi32>
      %14 = vector.broadcast %6 : i32 to vector<16x1xi32>
      %15 = arith.cmpi slt, %13, %14 : vector<16x1xi32>
      %16 = arith.mulf %12, %12 : vector<16x128xf32>
      %cst = arith.constant 0.000000e+00 : f32
      %17 = vector.shape_cast %15 : vector<16x1xi1> to vector<16x1xi1>
      %18 = vector.broadcast %17 : vector<16x1xi1> to vector<16x128xi1>
      %19 = vector.broadcast %cst : f32 to vector<16x128xf32>
      %20 = arith.select %18, %16, %19 : vector<16x128xi1>, vector<16x128xf32>
      %c0_7 = arith.constant 0 : index
      %c0_8 = arith.constant 0 : index
      %c0_9 = arith.constant 0 : index
      %21 = vector.load %arg4[%c0_7, %c0_8, %c0_9] : memref<1x8x128xf32, #tpu.memory_space<vmem>>, vector<1x8x128xf32>
      %22 = vector.shape_cast %21 : vector<1x8x128xf32> to vector<8x128xf32>
      %23 = vector.shape_cast %20 : vector<16x128xf32> to vector<2x8x128xf32>
      %cst_10 = arith.constant dense<0.000000e+00> : vector<8x128xf32>
      %24 = vector.multi_reduction <add>, %23, %cst_10 [0] : vector<2x8x128xf32> to vector<8x128xf32>
      %25 = arith.addf %22, %24 : vector<8x128xf32>
      %c0_11 = arith.constant 0 : index
      %c0_12 = arith.constant 0 : index
      %c0_13 = arith.constant 0 : index
      %26 = vector.load %arg4[%c0_11, %c0_12, %c0_13] : memref<1x8x128xf32, #tpu.memory_space<vmem>>, vector<1x8x128xf32>
      %27 = vector.shape_cast %26 : vector<1x8x128xf32> to vector<8x128xf32>
      %28 = vector.shape_cast %25 : vector<8x128xf32> to vector<1x8x128xf32>
      tpu.vector_store %arg4[%c0_11, %c0_12, %c0_13], %28 {strides = array<i32>} : memref<1x8x128xf32, #tpu.memory_space<vmem>>, vector<1x8x128xf32>,
    } else {
    }
    return
  }
  func.func @transform_0(%arg0: i32, %arg1: i32) -> (i32, i32) {
    %c1_i32 = arith.constant 1 : i32
    %0 = arith.muli %arg0, %c1_i32 : i32
    %1 = arith.addi %0, %arg1 : i32
    %c0_i32 = arith.constant 0 : i32
    %2 = arith.minsi %1, %c0_i32 : i32
    %c0_i32_0 = arith.constant 0 : i32
    %c0_i32_1 = arith.constant 0 : i32
    return %2, %c0_i32_0 : i32, i32
  }
  func.func @transform_1(%arg0: i32, %arg1: i32) -> (i32, i32) {
    %c1_i32 = arith.constant 1 : i32
    %0 = arith.muli %arg0, %c1_i32 : i32
    %1 = arith.addi %0, %arg1 : i32
    %c0_i32 = arith.constant 0 : i32
    %2 = arith.minsi %1, %c0_i32 : i32
    %c0_i32_0 = arith.constant 0 : i32
    %c0_i32_1 = arith.constant 0 : i32
    return %2, %c0_i32_0 : i32, i32
  }
  func.func @transform_2(%arg0: i32, %arg1: i32) -> (i32, i32, i32) {
    %c0_i32 = arith.constant 0 : i32
    %c0_i32_0 = arith.constant 0 : i32
    %c0_i32_1 = arith.constant 0 : i32
    return %arg0, %c0_i32, %c0_i32_0 : i32, i32, i32
  }
}

</mosaic_0001>

<llo_original>
// kernel: tpu_custom_call.1
$region0: #{tpu_custom_call.1}
  #allocation0 [shape = 'u32[]', space=smem, size = 0x4, offset = 0x4, fixed_abs, tag = 'smem constant byte address 0x4 - core index']
  #allocation1 [shape = 'u32[144,128]{1,0:T(1,128)}', space=vmem, size = 0x12000, scoped, tag = 'internal scratch']
  %s0 = inlined_call_operand.hbm [shape: f32[16,128], index: 0, kind: input, shape index: {}]
  %s1 = inlined_call_operand.hbm [shape: f32[16,128], index: 1, kind: input, shape index: {}]
  %s2 = inlined_call_operand.hbm [shape: f32[1,8,128], index: 2, kind: output, shape index: {}]
  %s3 = sld [smem:[#allocation0]]
  $region34: #{tpu_custom_call.1} parent=0
    _
  %s5 = ssub.s32 1, %s3
  %s6 = scalar_select 0, %s5, %s3
  $region1: #{tpu_custom_call.1} parent=0
    #allocation2 [shape = 'u8[8192]{0}', space=vmem, size = 0x2000, scoped, tag = 'input window, operand 0, single buffered']
    #allocation3 [shape = 's32[1]{0}', space=sflag, size = 0x4, scoped, tag = 'scoped memory for tpu_custom_call.1']
    #allocation4 [shape = 's32[1]{0}', space=sflag, size = 0x4, scoped, tag = 'scoped memory for tpu_custom_call.1']
    #allocation5 [shape = 'u8[8192]{0}', space=vmem, size = 0x2000, scoped, tag = 'input window, operand 1, single buffered']
    #allocation6 [shape = 's32[1]{0}', space=sflag, size = 0x4, scoped, tag = 'scoped memory for tpu_custom_call.1']
    #allocation7 [shape = 'u8[4096]{0}', space=vmem, size = 0x1000, scoped, tag = 'output window, operand 0, single buffered']
    %7 = vsyncpa [#allocation3], 0
    %8 = vsyncpa [#allocation6], 0
    %9 = vsyncpa [#allocation4], 0
    // Predicated region
    $region2: #{tpu_custom_call.1} parent=1 // pred_check
      _
    $region3: #{tpu_custom_call.1} parent=1 // pred_check_branch
      %11 = sbr.rel (0) target = $region5
    $region4: #{tpu_custom_call.1} parent=1 // pred_region
      %s12 = sadd.s32 0, 0
      %p13 = scmp.lt.s32.totalorder %s12, 0
      %s14 = scalar_select %p13, %s12, 0
      %s15 = smul.u32 2, %s14
      %s17 = ssub.s32 256, 256
      %18 = vsyncadd [#allocation3], %s17
      %s19 = smul.addr %s15, 128
      %s20 = scalar_lea.hbm %s0, %s19
      %s21 = sshll.u32 [#allocation2], 4
      %s22 = int_to_ptr.vmem [resolvable:$true] %s21
      %27 = dma.hbm_to_vmem [thread:$0]  %s20, 256, %s22, [#allocation3], 128, 128, 8
    $region5: #{tpu_custom_call.1} parent=1 // pred_fallthru
      _
    // Predicated region
    $region6: #{tpu_custom_call.1} parent=1 // pred_check
      _
    $region7: #{tpu_custom_call.1} parent=1 // pred_check_branch
      %29 = sbr.rel (0) target = $region9
    $region8: #{tpu_custom_call.1} parent=1 // pred_region
      %s30 = sadd.s32 0, 0
      %p31 = scmp.lt.s32.totalorder %s30, 0
      %s32 = scalar_select %p31, %s30, 0
      %s33 = smul.u32 2, %s32
      %s35 = ssub.s32 256, 256
      %36 = vsyncadd [#allocation6], %s35
      %s37 = smul.addr %s33, 128
      %s38 = scalar_lea.hbm %s1, %s37
      %s39 = sshll.u32 [#allocation5], 4
      %s40 = int_to_ptr.vmem [resolvable:$true] %s39
      %45 = dma.hbm_to_vmem [thread:$0]  %s38, 256, %s40, [#allocation6], 128, 128, 8
    $region9: #{tpu_custom_call.1} parent=1 // pred_fallthru
      _
    // Predicated region
    $region10: #{tpu_custom_call.1} parent=1 // pred_check
      _
    $region11: #{tpu_custom_call.1} parent=1 // pred_check_branch
      %47 = sbr.rel (0) target = $region13
    $region12: #{tpu_custom_call.1} parent=1 // pred_region
      %48 = dma.done [#allocation3], 256
    $region13: #{tpu_custom_call.1} parent=1 // pred_fallthru
      _
    // Predicated region
    $region14: #{tpu_custom_call.1} parent=1 // pred_check
      _
    $region15: #{tpu_custom_call.1} parent=1 // pred_check_branch
      %50 = sbr.rel (0) target = $region17
    $region16: #{tpu_custom_call.1} parent=1 // pred_region
      %51 = dma.done [#allocation6], 256
    $region17: #{tpu_custom_call.1} parent=1 // pred_fallthru
      _
    %s52 = sadd.s32 0, 0
    %p53 = scmp.lt.s32.totalorder %s52, 0
    %s54 = scalar_select %p53, %s52, 0
    %s55 = smul.u32 2, %s54
    %s56 = sadd.s32 0, 0
    %p57 = scmp.lt.s32.totalorder %s56, 0
    %s58 = scalar_select %p57, %s56, 0
    %s59 = smul.u32 2, %s58
    %p60 = scmp.eq.s32.totalorder 0, 0
    // Predicated region
    $region18: #{tpu_custom_call.1} parent=1 // pred_check
      %p61 = pneg %p60
    $region19: #{tpu_custom_call.1} parent=1 // pred_check_branch
      %63 = sbr.rel (%p61) target = $region21
    $region20: #{tpu_custom_call.1} parent=1 // pred_region
      %64 = vst [vmem:[#allocation7] sm:$0xff] 0.0
    $region21: #{tpu_custom_call.1} parent=1 // pred_fallthru
      _
    %s65 = sadd.s32 0, 0
    %s66 = smul.u32 %s65, 16
    %s67 = ssub.s32 16, %s66
    %p68 = scmp.gt.s32.totalorder %s67, 0
    // Predicated region
    $region22: #{tpu_custom_call.1} parent=1 // pred_check
      %p69 = pneg %p68
    $region23: #{tpu_custom_call.1} parent=1 // pred_check_branch
      %71 = sbr.rel (%p69) target = $region25
    $region24: #{tpu_custom_call.1} parent=1 // pred_region
      %v72 = vld [vmem:[#allocation2] sm:$0xff]
      %v73 = vld [vmem:[#allocation2 + $0x8] sm:$0xff]
      %v74 = vld [vmem:[#allocation5] sm:$0xff]
      %v75 = vld [vmem:[#allocation5 + $0x8] sm:$0xff]
      %v76 = vsub.f32 %v72, %v74
      %v77 = vsub.f32 %v73, %v75
      %v78 = vlaneseq
      %v79 = vshrl.u32 %v78, 7
      %v80 = vadd.s32 %v79, 8
      %v81 = vstv %s67
      %vm82 = vcmp.lt.s32.totalorder %v79, %v81
      %vm83 = vcmp.lt.s32.totalorder %v80, %v81
      %v84 = vmul.f32 %v76, %v76
      %v85 = vmul.f32 %v77, %v77
      %v86 = vsel %vm82, 1, 0
      %v87 = vsel %vm83, 1, 0
      %vm88 = vcmp.eq.s32.totalorder %v86, 1
      %vm89 = vcmp.eq.s32.totalorder %v87, 1
      %v90 = vsel %vm88, %v84, 0.0
      %v91 = vsel %vm89, %v85, 0.0
      %v92 = vld [vmem:[#allocation7] sm:$0xff]
      %v93 = vadd.f32 %v90, %v91
      %v94 = vadd.f32 %v92, %v93
      %95 = vst [vmem:[#allocation7] sm:$0xff] %v94
    $region25: #{tpu_custom_call.1} parent=1 // pred_fallthru
      _
    // Predicated region
    $region26: #{tpu_custom_call.1} parent=1 // pred_check
      _
    $region27: #{tpu_custom_call.1} parent=1 // pred_check_branch
      %97 = sbr.rel (0) target = $region29
    $region28: #{tpu_custom_call.1} parent=1 // pred_region
      %s99 = ssub.s32 128, 128
      %100 = vsyncadd [#allocation4], %s99
      %s102 = sshll.u32 [#allocation7], 4
      %s103 = int_to_ptr.vmem [resolvable:$true] %s102
      %105 = dma.vmem_to_hbm [thread:$0]  %s103, 128, %s2, [#allocation4]
    $region29: #{tpu_custom_call.1} parent=1 // pred_fallthru
      _
    // Predicated region
    $region30: #{tpu_custom_call.1} parent=1 // pred_check
      _
    $region31: #{tpu_custom_call.1} parent=1 // pred_check_branch
      %107 = sbr.rel (0) target = $region33
    $region32: #{tpu_custom_call.1} parent=1 // pred_region
      %108 = dma.done [#allocation4], 128
    $region33: #{tpu_custom_call.1} parent=1 // pred_fallthru
      _
    %109 = vsyncpa [#allocation3], 1
    %110 = vsyncpa [#allocation6], 1
    %111 = vsyncpa [#allocation4], 1

</llo_original>
